<compile_context>
chip_gen: v7x
topology: tpu7x:2x2x1
jax: 0.10.0
libtpu: 0.0.40
codegen_flags: <defaults>
</compile_context>

<pallas_src>
import functools

import jax
import jax.numpy as jnp
from jax import lax
from jax.experimental import pallas as pl
from jax.experimental.pallas import tpu as pltpu


def _round_up(x, m):
    return ((x + m - 1) // m) * m


def _raw_classifier_kernel(x_ref, w1_ref, b1_ref, wd_ref, bd_ref, o_ref):
    # x_ref:  (bm, d_input)      VMEM tile of the batch
    # w1_ref: (d_input, d_model) embed weight (transposed vs. PyTorch)
    # b1_ref: (1, d_model)       embed bias
    # wd_ref: (1, d_model)       (w2[:,0] - w2[:,1]) as a row vector
    # bd_ref: (1, 1)             b2[0] - b2[1]
    # o_ref:  (2, bm)            [p0 ; p1], batch on the lane axis
    x = x_ref[...]

    # embed + (dropout = identity, eval mode) + relu
    h = jnp.dot(x, w1_ref[...], preferred_element_type=jnp.float32) + b1_ref[...]
    h = jnp.maximum(h, 0.0)

    # Transposed head projection: d[0, j] = sum_k wd[0, k] * h[j, k]  -> (1, bm).
    # Contracting both operands on their last dim (q @ k.T pattern) keeps the
    # batch on the lane axis with no explicit transpose of h.
    d = lax.dot_general(
        wd_ref[...], h,
        dimension_numbers=(((1,), (1,)), ((), ())),
        preferred_element_type=jnp.float32,
    )
    d = d + bd_ref[...]

    # Exact binary softmax via the sigmoid identity:
    #   softmax([l0, l1])[0] = 1 / (1 + exp(l1 - l0)) = sigmoid(l0 - l1)
    p0 = 1.0 / (1.0 + jnp.exp(-d))

    # Direct sub-slice stores (lane-dense, no concatenate / relayout).
    o_ref[0:1, :] = p0.astype(o_ref.dtype)
    o_ref[1:2, :] = (1.0 - p0).astype(o_ref.dtype)


@functools.partial(jax.jit, static_argnames=("block_m",))
def raw_classifier_forward(x, w1_t, b1, w2_t, b2, *, block_m=16384):
    """x: (B, d_input) f32 -> (B, 2) f32 softmax probabilities."""
    B, d_input = x.shape
    d_model = w1_t.shape[1]
    n_cls = w2_t.shape[1]

    # Fold the 2-class head into a single difference column (computed once,
    # outside the kernel; tiny).
    w_diff = (w2_t[:, 0:1] - w2_t[:, 1:2]).T            # (1, d_model)
    b_diff = (b2[:, 0:1] - b2[:, 1:2]).reshape(1, 1)    # (1, 1)

    # Batch tile: multiple of 128 so the transposed output block is lane-dense;
    # no wrapper-side padding — Pallas masks the ragged final block.
    bm = min(_round_up(block_m, 128), _round_up(B, 128))
    grid = (pl.cdiv(B, bm),)

    # VMEM budget from the *padded* tile footprint:
    #   x tile:  bm x round_up(d_input, 128) f32 per buffer (lane padding)
    #   out tile: 8 x bm f32 per buffer ((2, bm) sublane-padded to 8)
    #   weights: tiny, double-buffered
    f32 = 4
    lane = 128
    x_buf = bm * _round_up(d_input, lane) * f32
    o_buf = 8 * bm * f32
    w_bytes = (
        _round_up(d_input, 8) * _round_up(d_model, lane)
        + 2 * 8 * _round_up(d_model, lane)
        + 8 * lane
    ) * f32
    est = 2 * (x_buf + o_buf) + 2 * w_bytes
    vmem_limit = min(48 << 20, max(32 << 20, est + (4 << 20)))

    out_t = pl.pallas_call(
        _raw_classifier_kernel,
        out_shape=jax.ShapeDtypeStruct((n_cls, B), jnp.float32),
        grid=grid,
        in_specs=[
            pl.BlockSpec((bm, d_input), lambda i: (i, 0)),        # x tile
            pl.BlockSpec((d_input, d_model), lambda i: (0, 0)),   # W1^T
            pl.BlockSpec((1, d_model), lambda i: (0, 0)),         # b1
            pl.BlockSpec((1, d_model), lambda i: (0, 0)),         # w_diff
            pl.BlockSpec((1, 1), lambda i: (0, 0)),               # b_diff
        ],
        out_specs=pl.BlockSpec((n_cls, bm), lambda i: (0, i)),
        compiler_params=pltpu.CompilerParams(
            dimension_semantics=("parallel",),
            vmem_limit_bytes=int(vmem_limit),
        ),
    )(x, w1_t, b1, w_diff, b_diff)

    # Un-transpose to the module's (B, 2) layout (cheap XLA op on a tiny array
    # relative to x traffic).
    return out_t.T


def _reference_forward(x, w1_t, b1, w2_t, b2):
    h = jnp.maximum(x @ w1_t + b1, 0.0)
    logits = h @ w2_t + b2
    return jax.nn.softmax(logits, axis=1)


if __name__ == "__main__":
    # Small shapes consistent with the module: d_input features -> d_model -> 2 classes.
    # batch intentionally not a multiple of 8/128 to exercise ragged-tail handling.
    batch, d_input, d_model, n_cls = 19, 16, 32, 2

    key = jax.random.PRNGKey(0)
    kx, kw1, kb1, kw2, kb2 = jax.random.split(key, 5)

    x = jax.random.normal(kx, (batch, d_input), dtype=jnp.float32)

    # Deterministic parameter init (PyTorch nn.Linear-style uniform bounds),
    # stored pre-transposed as (in, out).
    bound1 = 1.0 / jnp.sqrt(d_input)
    w1_t = jax.random.uniform(kw1, (d_input, d_model), jnp.float32, -bound1, bound1)
    b1 = jax.random.uniform(kb1, (1, d_model), jnp.float32, -bound1, bound1)

    bound2 = 1.0 / jnp.sqrt(d_model)
    w2_t = jax.random.uniform(kw2, (d_model, n_cls), jnp.float32, -bound2, bound2)
    b2 = jax.random.uniform(kb2, (1, n_cls), jnp.float32, -bound2, bound2)

    out = raw_classifier_forward(x, w1_t, b1, w2_t, b2)
    out = jax.block_until_ready(out)

    ref = _reference_forward(x, w1_t, b1, w2_t, b2)
    assert out.shape == (batch, n_cls)
    assert jnp.allclose(out, ref, atol=1e-4, rtol=1e-4), "mismatch vs. JAX reference"
    assert jnp.allclose(jnp.sum(out, axis=1), 1.0, atol=1e-5), "softmax rows must sum to 1"

    print("KERNEL_OK")
</pallas_src>

<mosaic_0001>
module attributes {stable_mosaic.version = 11 : i64} {
  func.func @_raw_classifier_kernel(%arg0: i32, %arg1: memref<128x16xf32, #tpu.memory_space<vmem>>, %arg2: memref<16x32xf32, #tpu.memory_space<vmem>>, %arg3: memref<1x32xf32, #tpu.memory_space<vmem>>, %arg4: memref<1x32xf32, #tpu.memory_space<vmem>>, %arg5: memref<1x1xf32, #tpu.memory_space<vmem>>, %arg6: memref<2x128xf32, #tpu.memory_space<vmem>>) attributes {dimension_semantics = [#tpu.dimension_semantics<parallel>], iteration_bounds = array<i64: 1>, scalar_prefetch = 0 : i64, scratch_operands = 0 : i64, tpu.core_type = #tpu.core_type<tc>, window_params = [{transform_indices = @transform_0, window_bounds = array<i64: 128, 16>}, {pipeline_mode = #tpu.pipeline_mode<synchronous>, transform_indices = @transform_1, window_bounds = array<i64: 16, 32>}, {pipeline_mode = #tpu.pipeline_mode<synchronous>, transform_indices = @transform_2, window_bounds = array<i64: 1, 32>}, {pipeline_mode = #tpu.pipeline_mode<synchronous>, transform_indices = @transform_3, window_bounds = array<i64: 1, 32>}, {pipeline_mode = #tpu.pipeline_mode<synchronous>, transform_indices = @transform_4, window_bounds = array<i64: 1, 1>}, {transform_indices = @transform_5, window_bounds = array<i64: 2, 128>}]} {
    %c0 = arith.constant 0 : index
    %c0_0 = arith.constant 0 : index
    %0 = vector.load %arg1[%c0, %c0_0] : memref<128x16xf32, #tpu.memory_space<vmem>>, vector<128x16xf32>
    %c0_1 = arith.constant 0 : index
    %c0_2 = arith.constant 0 : index
    %1 = vector.load %arg2[%c0_1, %c0_2] : memref<16x32xf32, #tpu.memory_space<vmem>>, vector<16x32xf32>
    %cst = arith.constant dense<0.000000e+00> : vector<128x32xf32>
    %2 = tpu.matmul %0, %1, %cst {dimension_numbers = #tpu.dot_dimension_numbers<[1], [0], [0], [1], [0, 0, 1, 1], [], []>} : vector<128x16xf32>, vector<16x32xf32>, vector<128x32xf32> -> vector<128x32xf32>
    %c0_3 = arith.constant 0 : index
    %c0_4 = arith.constant 0 : index
    %3 = vector.load %arg3[%c0_3, %c0_4] : memref<1x32xf32, #tpu.memory_space<vmem>>, vector<1x32xf32>
    %4 = vector.broadcast %3 : vector<1x32xf32> to vector<128x32xf32>
    %5 = arith.addf %2, %4 : vector<128x32xf32>
    %cst_5 = arith.constant 0.000000e+00 : f32
    %6 = vector.broadcast %cst_5 : f32 to vector<128x32xf32>
    %7 = arith.maximumf %5, %6 : vector<128x32xf32>
    %c0_6 = arith.constant 0 : index
    %c0_7 = arith.constant 0 : index
    %8 = vector.load %arg4[%c0_6, %c0_7] : memref<1x32xf32, #tpu.memory_space<vmem>>, vector<1x32xf32>
    %cst_8 = arith.constant dense<0.000000e+00> : vector<1x128xf32>
    %9 = tpu.matmul %8, %7, %cst_8 {dimension_numbers = #tpu.dot_dimension_numbers<[1], [1], [0], [0], [0, 0, 1, 0], [], []>} : vector<1x32xf32>, vector<128x32xf32>, vector<1x128xf32> -> vector<1x128xf32>
    %c0_9 = arith.constant 0 : index
    %c0_10 = arith.constant 0 : index
    %10 = vector.load %arg5[%c0_9, %c0_10] : memref<1x1xf32, #tpu.memory_space<vmem>>, vector<1x1xf32>
    %11 = vector.broadcast %10 : vector<1x1xf32> to vector<1x128xf32>
    %12 = arith.addf %9, %11 : vector<1x128xf32>
    %cst_11 = arith.constant 0.000000e+00 : f32
    %13 = vector.broadcast %cst_11 : f32 to vector<1x128xf32>
    %14 = arith.subf %13, %12 : vector<1x128xf32>
    %15 = math.exp %14 : vector<1x128xf32>
    %cst_12 = arith.constant 1.000000e+00 : f32
    %16 = vector.broadcast %cst_12 : f32 to vector<1x128xf32>
    %17 = arith.addf %16, %15 : vector<1x128xf32>
    %cst_13 = arith.constant 1.000000e+00 : f32
    %18 = vector.broadcast %cst_13 : f32 to vector<1x128xf32>
    %19 = arith.divf %18, %17 : vector<1x128xf32>
    %c0_14 = arith.constant 0 : index
    %c0_15 = arith.constant 0 : index
    %20 = vector.load %arg6[%c0_14, %c0_15] : memref<2x128xf32, #tpu.memory_space<vmem>>, vector<1x128xf32>
    tpu.vector_store %arg6[%c0_14, %c0_15], %19 {strides = array<i32>} : memref<2x128xf32, #tpu.memory_space<vmem>>, vector<1x128xf32>,
    %cst_16 = arith.constant 1.000000e+00 : f32
    %21 = vector.broadcast %cst_16 : f32 to vector<1x128xf32>
    %22 = arith.subf %21, %19 : vector<1x128xf32>
    %c1 = arith.constant 1 : index
    %c0_17 = arith.constant 0 : index
    %23 = vector.load %arg6[%c1, %c0_17] : memref<2x128xf32, #tpu.memory_space<vmem>>, vector<1x128xf32>
    tpu.vector_store %arg6[%c1, %c0_17], %22 {strides = array<i32>} : memref<2x128xf32, #tpu.memory_space<vmem>>, vector<1x128xf32>,
    return
  }
  func.func @transform_0(%arg0: i32) -> (i32, i32) {
    %c0_i32 = arith.constant 0 : i32
    %c0_i32_0 = arith.constant 0 : i32
    return %arg0, %c0_i32 : i32, i32
  }
  func.func @transform_1(%arg0: i32) -> (i32, i32) {
    %c0_i32 = arith.constant 0 : i32
    %c0_i32_0 = arith.constant 0 : i32
    %c0_i32_1 = arith.constant 0 : i32
    return %c0_i32, %c0_i32_0 : i32, i32
  }
  func.func @transform_2(%arg0: i32) -> (i32, i32) {
    %c0_i32 = arith.constant 0 : i32
    %c0_i32_0 = arith.constant 0 : i32
    %c0_i32_1 = arith.constant 0 : i32
    return %c0_i32, %c0_i32_0 : i32, i32
  }
  func.func @transform_3(%arg0: i32) -> (i32, i32) {
    %c0_i32 = arith.constant 0 : i32
    %c0_i32_0 = arith.constant 0 : i32
    %c0_i32_1 = arith.constant 0 : i32
    return %c0_i32, %c0_i32_0 : i32, i32
  }
  func.func @transform_4(%arg0: i32) -> (i32, i32) {
    %c0_i32 = arith.constant 0 : i32
    %c0_i32_0 = arith.constant 0 : i32
    %c0_i32_1 = arith.constant 0 : i32
    return %c0_i32, %c0_i32_0 : i32, i32
  }
  func.func @transform_5(%arg0: i32) -> (i32, i32) {
    %c0_i32 = arith.constant 0 : i32
    %c0_i32_0 = arith.constant 0 : i32
    return %c0_i32, %arg0 : i32, i32
  }
}

</mosaic_0001>

<llo_original>
// kernel: raw_classifier_forward.1
$region0: #{raw_classifier_forward.1}
  #allocation0 [shape = 'u32[]', space=smem, size = 0x4, offset = 0x4, fixed_abs, tag = 'smem constant byte address 0x4 - core index']
  #allocation1 [shape = 'u32[144,128]{1,0:T(1,128)}', space=vmem, size = 0x12000, scoped, tag = 'internal scratch']
  #allocation2 [shape = 'f32[1,1]{1,0:T(1,128)S(1)}', space=vmem, size = 0x200, scoped, tag = 'scoped memory for raw_classifier_forward.1']
  %s0 = inlined_call_operand.vmem [shape: f32[19,16], index: 0, kind: input, shape index: {}]
  %s1 = inlined_call_operand.vmem [shape: f32[16,32], index: 1, kind: input, shape index: {}]
  %s2 = inlined_call_operand.vmem [shape: f32[1,32], index: 2, kind: input, shape index: {}]
  %s3 = inlined_call_operand.vmem [shape: f32[1,32], index: 3, kind: input, shape index: {}]
  %s4 = inlined_call_operand.<no memory space> [shape: f32[1,1], index: 4, kind: input, shape index: {}]
  %s5 = inlined_call_operand.hbm [shape: f32[2,19], index: 5, kind: output, shape index: {}]
  %s6 = sld [smem:[#allocation0]]
  $region30: #{raw_classifier_forward.1} parent=0
    _
  %s8 = ssub.s32 1, %s6
  %s9 = scalar_select 0, %s8, %s6
  %v10 = vstv %s4
  %11 = vst [vmem:[#allocation2] sm:$0x1] %v10
  $region1: #{raw_classifier_forward.1} parent=0
    #allocation3 [shape = 'u8[1024]{0}', space=vmem, size = 0x400, scoped, tag = 'output window, operand 0, single buffered']
    #allocation4 [shape = 's32[1]{0}', space=sflag, size = 0x4, scoped, tag = 'scoped memory for raw_classifier_forward.1']
    %12 = vsyncpa [#allocation4], 0
    // Predicated region
    $region2: #{raw_classifier_forward.1} parent=1 // pred_check
      _
    $region3: #{raw_classifier_forward.1} parent=1 // pred_check_branch
      %14 = sbr.rel (0) target = $region5
    $region4: #{raw_classifier_forward.1} parent=1 // pred_region
      _
    $region5: #{raw_classifier_forward.1} parent=1 // pred_fallthru
      _
    // Predicated region
    $region6: #{raw_classifier_forward.1} parent=1 // pred_check
      _
    $region7: #{raw_classifier_forward.1} parent=1 // pred_check_branch
      %16 = sbr.rel (0) target = $region9
    $region8: #{raw_classifier_forward.1} parent=1 // pred_region
      _
    $region9: #{raw_classifier_forward.1} parent=1 // pred_fallthru
      _
    // Predicated region
    $region10: #{raw_classifier_forward.1} parent=1 // pred_check
      _
    $region11: #{raw_classifier_forward.1} parent=1 // pred_check_branch
      %18 = sbr.rel (0) target = $region13
    $region12: #{raw_classifier_forward.1} parent=1 // pred_region
      _
    $region13: #{raw_classifier_forward.1} parent=1 // pred_fallthru
      _
    // Predicated region
    $region14: #{raw_classifier_forward.1} parent=1 // pred_check
      _
    $region15: #{raw_classifier_forward.1} parent=1 // pred_check_branch
      %20 = sbr.rel (0) target = $region17
    $region16: #{raw_classifier_forward.1} parent=1 // pred_region
      _
    $region17: #{raw_classifier_forward.1} parent=1 // pred_fallthru
      _
    // Predicated region
    $region18: #{raw_classifier_forward.1} parent=1 // pred_check
      _
    $region19: #{raw_classifier_forward.1} parent=1 // pred_check_branch
      %22 = sbr.rel (0) target = $region21
    $region20: #{raw_classifier_forward.1} parent=1 // pred_region
      _
    $region21: #{raw_classifier_forward.1} parent=1 // pred_fallthru
      _
    %v23 = vld [vmem:[%s0] sm:$0xff]
    %v24 = vld [vmem:[%s0 + $0x8] sm:$0xff]
    %v25 = vld [vmem:[%s0 + $0x10] sm:$0xff]
    %v26 = vld [vmem:[%s0 + $0x18] sm:$0xff]
    %v27 = vld [vmem:[%s0 + $0x20] sm:$0xff]
    %v28 = vld [vmem:[%s0 + $0x28] sm:$0xff]
    %v29 = vld [vmem:[%s0 + $0x30] sm:$0xff]
    %v30 = vld [vmem:[%s0 + $0x38] sm:$0xff]
    %v31 = vld [vmem:[%s0 + $0x40] sm:$0xff]
    %v32 = vld [vmem:[%s0 + $0x48] sm:$0xff]
    %v33 = vld [vmem:[%s0 + $0x50] sm:$0xff]
    %v34 = vld [vmem:[%s0 + $0x58] sm:$0xff]
    %v35 = vld [vmem:[%s0 + $0x60] sm:$0xff]
    %v36 = vld [vmem:[%s0 + $0x68] sm:$0xff]
    %v37 = vld [vmem:[%s0 + $0x70] sm:$0xff]
    %v38 = vld [vmem:[%s0 + $0x78] sm:$0xff]
    %v39 = vld [vmem:[%s1] sm:$0xff]
    %v40 = vld [vmem:[%s1 + $0x8] sm:$0xff]
    %v41 = vld [vmem:[%s2] sm:$0x1]
    %v43 = vlaneseq
    %v44 = vshrl.u32 %v43, 7
    %v45 = vsub.s32 0, %v44
    %v46 = vrot.slane %v41, %v45
    %vm48 = vcmask 130048
    %v50 = vsel %vm48, %v23, 0
    %v53 = vsel %vm48, %v24, 0
    %v56 = vsel %vm48, %v25, 0
    %v59 = vsel %vm48, %v26, 0
    %v62 = vsel %vm48, %v27, 0
    %v65 = vsel %vm48, %v28, 0
    %v68 = vsel %vm48, %v29, 0
    %v71 = vsel %vm48, %v30, 0
    %v74 = vsel %vm48, %v31, 0
    %v77 = vsel %vm48, %v32, 0
    %v80 = vsel %vm48, %v33, 0
    %v83 = vsel %vm48, %v34, 0
    %v86 = vsel %vm48, %v35, 0
    %v89 = vsel %vm48, %v36, 0
    %v92 = vsel %vm48, %v37, 0
    %v95 = vsel %vm48, %v38, 0
    %97 = vmatprep.subr.mxu0 0.0
    %98 = vmatpush1.msra.mxu0 %v39
    %99 = vmatprep.subr.mxu0 0.0
    %100 = vmatpush1.msra.mxu0 %v40
    %101 = vmatprep.subr.mxu0 0.0
    %102 = vmatpush1.msra.mxu0 0.0
    %103 = vmatprep.subr.mxu0 0.0
    %104 = vmatpush1.msra.mxu0 0.0
    %105 = vmatprep.subr.mxu0 0.0
    %106 = vmatpush1.msra.mxu0 0.0
    %107 = vmatprep.subr.mxu0 0.0
    %108 = vmatpush1.msra.mxu0 0.0
    %109 = vmatprep.subr.mxu0 0.0
    %110 = vmatpush1.msra.mxu0 0.0
    %111 = vmatprep.subr.mxu0 0.0
    %112 = vmatpush1.msra.mxu0 0.0
    %113 = vmatprep.subr.mxu0 0.0
    %114 = vmatpush1.msra.mxu0 0.0
    %115 = vmatprep.subr.mxu0 0.0
    %116 = vmatpush1.msra.mxu0 0.0
    %117 = vmatprep.subr.mxu0 0.0
    %118 = vmatpush1.msra.mxu0 0.0
    %119 = vmatprep.subr.mxu0 0.0
    %120 = vmatpush1.msra.mxu0 0.0
    %121 = vmatprep.subr.mxu0 0.0
    %122 = vmatpush1.msra.mxu0 0.0
    %123 = vmatprep.subr.mxu0 0.0
    %124 = vmatpush1.msra.mxu0 0.0
    %125 = vmatprep.subr.mxu0 0.0
    %126 = vmatpush1.msra.mxu0 0.0
    %127 = vmatprep.subr.mxu0 0.0
    %128 = vmatpush1.msra.mxu0 0.0
    %129 = vmatprep.subr.mxu0 0.0
    %130 = vmatpush1.msra.mxu0 0.0
    %131 = vmatprep.subr.mxu0 0.0
    %132 = vmatpush1.msra.mxu0 0.0
    %133 = vmatprep.subr.mxu0 0.0
    %134 = vmatpush1.msra.mxu0 0.0
    %135 = vmatprep.subr.mxu0 0.0
    %136 = vmatpush1.msra.mxu0 0.0
    %137 = vmatprep.subr.mxu0 0.0
    %138 = vmatpush1.msra.mxu0 0.0
    %139 = vmatprep.subr.mxu0 0.0
    %140 = vmatpush1.msra.mxu0 0.0
    %141 = vmatprep.subr.mxu0 0.0
    %142 = vmatpush1.msra.mxu0 0.0
    %143 = vmatprep.subr.mxu0 0.0
    %144 = vmatpush1.msra.mxu0 0.0
    %145 = vmatprep.subr.mxu0 0.0
    %146 = vmatpush1.msra.mxu0 0.0
    %147 = vmatprep.subr.mxu0 0.0
    %148 = vmatpush1.msra.mxu0 0.0
    %149 = vmatprep.subr.mxu0 0.0
    %150 = vmatpush1.msra.mxu0 0.0
    %151 = vmatprep.subr.mxu0 0.0
    %152 = vmatpush1.msra.mxu0 0.0
    %153 = vmatprep.subr.mxu0 0.0
    %154 = vmatpush1.msra.mxu0 0.0
    %155 = vmatprep.subr.mxu0 0.0
    %156 = vmatpush1.msra.mxu0 0.0
    %157 = vmatprep.subr.mxu0 0.0
    %158 = vmatpush1.msra.mxu0 0.0
    %159 = vmatprep.subr.mxu0 0.0
    %160 = vmatpush1.msra.mxu0 0.0
    %161 = vmatprep.mubr.f32.mxu0 0.0
    %162 = vmatmul.mubr.f32.gmra.mrb[0].mxu0 %v50
    %v163 = vpop.f32.mrb[0].mxu0
    %v164 = vadd.f32 %v46, %v163
    %v165 = vpop.f32.mrb[0].mxu0
    %166 = vmatprep.mubr.f32.mxu0 0.0
    %167 = vmatmul.mubr.f32.gmra.mrb[0].mxu0 %v53
    %v168 = vpop.f32.mrb[0].mxu0
    %v169 = vadd.f32 %v46, %v168
    %v170 = vpop.f32.mrb[0].mxu0
    %171 = vmatprep.mubr.f32.mxu0 0.0
    %172 = vmatmul.mubr.f32.gmra.mrb[0].mxu0 %v56
    %v173 = vpop.f32.mrb[0].mxu0
    %v174 = vadd.f32 %v46, %v173
    %v175 = vpop.f32.mrb[0].mxu0
    %176 = vmatprep.mubr.f32.mxu0 0.0
    %177 = vmatmul.mubr.f32.gmra.mrb[0].mxu0 %v59
    %v178 = vpop.f32.mrb[0].mxu0
    %v179 = vadd.f32 %v46, %v178
    %v180 = vpop.f32.mrb[0].mxu0
    %181 = vmatprep.mubr.f32.mxu0 0.0
    %182 = vmatmul.mubr.f32.gmra.mrb[0].mxu0 %v62
    %v183 = vpop.f32.mrb[0].mxu0
    %v184 = vadd.f32 %v46, %v183
    %v185 = vpop.f32.mrb[0].mxu0
    %186 = vmatprep.mubr.f32.mxu0 0.0
    %187 = vmatmul.mubr.f32.gmra.mrb[0].mxu0 %v65
    %v188 = vpop.f32.mrb[0].mxu0
    %v189 = vadd.f32 %v46, %v188
    %v190 = vpop.f32.mrb[0].mxu0
    %191 = vmatprep.mubr.f32.mxu0 0.0
    %192 = vmatmul.mubr.f32.gmra.mrb[0].mxu0 %v68
    %v193 = vpop.f32.mrb[0].mxu0
    %v194 = vadd.f32 %v46, %v193
    %v195 = vpop.f32.mrb[0].mxu0
    %196 = vmatprep.mubr.f32.mxu0 0.0
    %197 = vmatmul.mubr.f32.gmra.mrb[0].mxu0 %v71
    %v198 = vpop.f32.mrb[0].mxu0
    %v199 = vadd.f32 %v46, %v198
    %v200 = vpop.f32.mrb[0].mxu0
    %201 = vmatprep.mubr.f32.mxu0 0.0
    %202 = vmatmul.mubr.f32.gmra.mrb[0].mxu0 %v74
    %v203 = vpop.f32.mrb[0].mxu0
    %v204 = vadd.f32 %v46, %v203
    %v205 = vpop.f32.mrb[0].mxu0
    %206 = vmatprep.mubr.f32.mxu0 0.0
    %207 = vmatmul.mubr.f32.gmra.mrb[0].mxu0 %v77
    %v208 = vpop.f32.mrb[0].mxu0
    %v209 = vadd.f32 %v46, %v208
    %v210 = vpop.f32.mrb[0].mxu0
    %211 = vmatprep.mubr.f32.mxu0 0.0
    %212 = vmatmul.mubr.f32.gmra.mrb[0].mxu0 %v80
    %v213 = vpop.f32.mrb[0].mxu0
    %v214 = vadd.f32 %v46, %v213
    %v215 = vpop.f32.mrb[0].mxu0
    %216 = vmatprep.mubr.f32.mxu0 0.0
    %217 = vmatmul.mubr.f32.gmra.mrb[0].mxu0 %v83
    %v218 = vpop.f32.mrb[0].mxu0
    %v219 = vadd.f32 %v46, %v218
    %v220 = vpop.f32.mrb[0].mxu0
    %221 = vmatprep.mubr.f32.mxu0 0.0
    %222 = vmatmul.mubr.f32.gmra.mrb[0].mxu0 %v86
    %v223 = vpop.f32.mrb[0].mxu0
    %v224 = vadd.f32 %v46, %v223
    %v225 = vpop.f32.mrb[0].mxu0
    %226 = vmatprep.mubr.f32.mxu0 0.0
    %227 = vmatmul.mubr.f32.gmra.mrb[0].mxu0 %v89
    %v228 = vpop.f32.mrb[0].mxu0
    %v229 = vadd.f32 %v46, %v228
    %v230 = vpop.f32.mrb[0].mxu0
    %231 = vmatprep.mubr.f32.mxu0 0.0
    %232 = vmatmul.mubr.f32.gmra.mrb[0].mxu0 %v92
    %v233 = vpop.f32.mrb[0].mxu0
    %v234 = vadd.f32 %v46, %v233
    %v235 = vpop.f32.mrb[0].mxu0
    %236 = vmatprep.mubr.f32.mxu0 0.0
    %237 = vmatmul.mubr.f32.gmra.mrb[0].mxu0 %v95
    %v238 = vpop.f32.mrb[0].mxu0
    %v239 = vadd.f32 %v46, %v238
    %v240 = vpop.f32.mrb[0].mxu0
    %241 = vdwg.mxu0
    %v242 = vmax.f32 %v164, 0.0
    %v243 = vmax.f32 %v169, 0.0
    %v244 = vmax.f32 %v174, 0.0
    %v245 = vmax.f32 %v179, 0.0
    %v246 = vmax.f32 %v184, 0.0
    %v247 = vmax.f32 %v189, 0.0
    %v248 = vmax.f32 %v194, 0.0
    %v249 = vmax.f32 %v199, 0.0
    %v250 = vmax.f32 %v204, 0.0
    %v251 = vmax.f32 %v209, 0.0
    %v252 = vmax.f32 %v214, 0.0
    %v253 = vmax.f32 %v219, 0.0
    %v254 = vmax.f32 %v224, 0.0
    %v255 = vmax.f32 %v229, 0.0
    %v256 = vmax.f32 %v234, 0.0
    %v257 = vmax.f32 %v239, 0.0
    %v258 = vld [vmem:[%s3] sm:$0x1]
    %v259 = vld [vmem:[#allocation2] sm:$0x1]
    %261 = vset.pattern.permute.xlu0 0
    %262 = vperm.xlu0 %261, %v259
    %v263 = vpop.permute.xlu0 %262
    %v265 = vlaneseq
    %v266 = vshrl.u32 %v265, 7
    %v267 = vsub.s32 0, %v266
    %v268 = vrot.slane %v263, %v267
    %vm269 = vcmask 261120
    %v271 = vsel %vm269, %v258, 0
    %v274 = vsel %vm269, %v242, 0
    %v277 = vsel %vm269, %v243, 0
    %v280 = vsel %vm269, %v244, 0
    %v283 = vsel %vm269, %v245, 0
    %v286 = vsel %vm269, %v246, 0
    %v289 = vsel %vm269, %v247, 0
    %v292 = vsel %vm269, %v248, 0
    %v295 = vsel %vm269, %v249, 0
    %v298 = vsel %vm269, %v250, 0
    %v301 = vsel %vm269, %v251, 0
    %v304 = vsel %vm269, %v252, 0
    %v307 = vsel %vm269, %v253, 0
    %v310 = vsel %vm269, %v254, 0
    %v313 = vsel %vm269, %v255, 0
    %v316 = vsel %vm269, %v256, 0
    %v319 = vsel %vm269, %v257, 0
    %321 = vmatprep.subr.mxu0 0.0
    %322 = vmatpush1.xpose.msra.mxu0 %v274
    %323 = vmatprep.subr.mxu0 0.0
    %324 = vmatpush1.xpose.msra.mxu0 %v277
    %325 = vmatprep.subr.mxu0 0.0
    %326 = vmatpush1.xpose.msra.mxu0 %v280
    %327 = vmatprep.subr.mxu0 0.0
    %328 = vmatpush1.xpose.msra.mxu0 %v283
    %329 = vmatprep.subr.mxu0 0.0
    %330 = vmatpush1.xpose.msra.mxu0 %v286
    %331 = vmatprep.subr.mxu0 0.0
    %332 = vmatpush1.xpose.msra.mxu0 %v289
    %333 = vmatprep.subr.mxu0 0.0
    %334 = vmatpush1.xpose.msra.mxu0 %v292
    %335 = vmatprep.subr.mxu0 0.0
    %336 = vmatpush1.xpose.msra.mxu0 %v295
    %337 = vmatprep.subr.mxu0 0.0
    %338 = vmatpush1.xpose.msra.mxu0 %v298
    %339 = vmatprep.subr.mxu0 0.0
    %340 = vmatpush1.xpose.msra.mxu0 %v301
    %341 = vmatprep.subr.mxu0 0.0
    %342 = vmatpush1.xpose.msra.mxu0 %v304
    %343 = vmatprep.subr.mxu0 0.0
    %344 = vmatpush1.xpose.msra.mxu0 %v307
    %345 = vmatprep.subr.mxu0 0.0
    %346 = vmatpush1.xpose.msra.mxu0 %v310
    %347 = vmatprep.subr.mxu0 0.0
    %348 = vmatpush1.xpose.msra.mxu0 %v313
    %349 = vmatprep.subr.mxu0 0.0
    %350 = vmatpush1.xpose.msra.mxu0 %v316
    %351 = vmatprep.subr.mxu0 0.0
    %352 = vmatpush1.xpose.msra.mxu0 %v319
    %353 = vmatprep.subr.mxu0 0.0
    %354 = vmatpush1.xpose.msra.mxu0 0.0
    %355 = vmatprep.subr.mxu0 0.0
    %356 = vmatpush1.xpose.msra.mxu0 0.0
    %357 = vmatprep.subr.mxu0 0.0
    %358 = vmatpush1.xpose.msra.mxu0 0.0
    %359 = vmatprep.subr.mxu0 0.0
    %360 = vmatpush1.xpose.msra.mxu0 0.0
    %361 = vmatprep.subr.mxu0 0.0
    %362 = vmatpush1.xpose.msra.mxu0 0.0
    %363 = vmatprep.subr.mxu0 0.0
    %364 = vmatpush1.xpose.msra.mxu0 0.0
    %365 = vmatprep.subr.mxu0 0.0
    %366 = vmatpush1.xpose.msra.mxu0 0.0
    %367 = vmatprep.subr.mxu0 0.0
    %368 = vmatpush1.xpose.msra.mxu0 0.0
    %369 = vmatprep.subr.mxu0 0.0
    %370 = vmatpush1.xpose.msra.mxu0 0.0
    %371 = vmatprep.subr.mxu0 0.0
    %372 = vmatpush1.xpose.msra.mxu0 0.0
    %373 = vmatprep.subr.mxu0 0.0
    %374 = vmatpush1.xpose.msra.mxu0 0.0
    %375 = vmatprep.subr.mxu0 0.0
    %376 = vmatpush1.xpose.msra.mxu0 0.0
    %377 = vmatprep.subr.mxu0 0.0
    %378 = vmatpush1.xpose.msra.mxu0 0.0
    %379 = vmatprep.subr.mxu0 0.0
    %380 = vmatpush1.xpose.msra.mxu0 0.0
    %381 = vmatprep.subr.mxu0 0.0
    %382 = vmatpush1.xpose.msra.mxu0 0.0
    %383 = vmatprep.subr.mxu0 0.0
    %384 = vmatpush1.xpose.msra.mxu0 0.0
    %385 = vmatprep.mubr.f32.mxu0 0.0
    %386 = vmatmul.mubr.f32.gmra.mrb[0].mxu0 %v271
    %v387 = vpop.f32.mrb[0].mxu0
    %v388 = vadd.f32 %v268, %v387
    %v389 = vpop.f32.mrb[0].mxu0
    %390 = vdwg.mxu0
    %v391 = vsub.f32 0.0, %v388
    %v392 = vmul.f32 %v391, 1.442695
    %v393 = vpow.pop %v392
    %v394 = vadd.f32 %v393, 1.0
    %v395 = vrcp.pop %v394
    %v396 = vmul.f32 1.0, %v395
    %397 = vst [vmem:[#allocation3] sm:$0x1] %v396
    %v398 = vsub.f32 1.0, %v396
    %399 = vst [vmem:[#allocation3 + $0x1] sm:$0x1] %v398
    // Predicated region
    $region22: #{raw_classifier_forward.1} parent=1 // pred_check
      _
    $region23: #{raw_classifier_forward.1} parent=1 // pred_check_branch
      %401 = sbr.rel (0) target = $region25
    $region24: #{raw_classifier_forward.1} parent=1 // pred_region
      %s403 = ssub.s32 32, 32
      %404 = vsyncadd [#allocation4], %s403
      %s406 = sshll.u32 [#allocation3], 4
      %s407 = int_to_ptr.vmem [resolvable:$true] %s406
      %409 = dma.vmem_to_hbm [thread:$0]  %s407, 32, %s5, [#allocation4]
    $region25: #{raw_classifier_forward.1} parent=1 // pred_fallthru
      _
    // Predicated region
    $region26: #{raw_classifier_forward.1} parent=1 // pred_check
      _
    $region27: #{raw_classifier_forward.1} parent=1 // pred_check_branch
      %411 = sbr.rel (0) target = $region29
    $region28: #{raw_classifier_forward.1} parent=1 // pred_region
      %412 = dma.done [#allocation4], 32
    $region29: #{raw_classifier_forward.1} parent=1 // pred_fallthru
      _
    %413 = vsyncpa [#allocation4], 1

</llo_original>
